<compile_context>
chip_gen: v7x
topology: tpu7x:2x2x1
jax: 0.10.0
libtpu: 0.0.40
codegen_flags: <defaults>
</compile_context>

<pallas_src>
import functools
import math

import jax
import jax.numpy as jnp
from jax import lax
from jax.experimental import pallas as pl
from jax.experimental.pallas import tpu as pltpu

LN_EPS = 1e-5  # torch.nn.LayerNorm default


def _round_up(n: int, m: int) -> int:
    return ((n + m - 1) // m) * m


def _sublane(dtype) -> int:
    """Sublane granularity for a dtype (rows packed per vreg sublane group)."""
    return {4: 8, 2: 16, 1: 32}.get(jnp.dtype(dtype).itemsize, 8)


def _vmem_capacity_bytes() -> int:
    """Physical VMEM per TensorCore; conservative fallback if unqueryable."""
    try:
        cap = int(pltpu.get_tpu_info().vmem_capacity_bytes)
        if cap > 0:
            return cap
    except Exception:
        pass
    return 64 * 1024 * 1024  # v7x per-TC size: safe lower bound everywhere


# ---------------------------------------------------------------------------
# Kernels
# ---------------------------------------------------------------------------
def _mlp_kernel_resident(x_ref, ln_w_ref, ln_b_ref, w1_ref, b1_ref, w2_ref,
                         b2_ref, o_ref, *, d_in: int, n_pad: int):
    """Fast path: both weights fully resident in VMEM; 1-D row grid."""
    x = x_ref[...].astype(jnp.float32)
    inv_d = 1.0 / d_in

    # LayerNorm over the real feature width.  Padded lanes of x are zero, so
    # sum(x) is exact; their contribution to sum(xc^2) is n_pad * mean^2 and
    # is removed algebraically (no iota/compare/select mask -> fewer VPU ops).
    mean = jnp.sum(x, axis=-1, keepdims=True) * inv_d
    xc = x - mean
    sq = jnp.sum(xc * xc, axis=-1, keepdims=True)
    if n_pad:
        sq = sq - n_pad * (mean * mean)
    inv = lax.rsqrt(sq * inv_d + LN_EPS)
    # ln_w / ln_b are zero-padded, so h's padded lanes are exactly zero.
    h = xc * (inv * ln_w_ref[...].astype(jnp.float32)) \
        + ln_b_ref[...].astype(jnp.float32)

    # Linear(in, in) + ReLU: feed the MXU in the stored weight dtype, f32 acc.
    h1 = jnp.dot(h.astype(w1_ref.dtype), w1_ref[...],
                 preferred_element_type=jnp.float32)
    h1 = jnp.maximum(h1 + b1_ref[...].astype(jnp.float32), 0.0)

    # Linear(in, out)
    y = jnp.dot(h1.astype(w2_ref.dtype), w2_ref[...],
                preferred_element_type=jnp.float32)
    o_ref[...] = (y + b2_ref[...].astype(jnp.float32)).astype(o_ref.dtype)


def _mlp_kernel_tiled(x_ref, ln_w_ref, ln_b_ref, w1_ref, b1_ref, w2_ref,
                      b2_ref, o_ref, h_ref, acc_ref, *, d_in: int, n_pad: int):
    """Fallback for large d_in: grid = (row_tiles, hidden_tiles).

    W1 is tiled over its output columns, W2 over its K dimension; partial
    products are accumulated in an f32 VMEM scratch.  LayerNorm is computed
    once per row tile (j == 0) and cached in VMEM.
    """
    j = pl.program_id(1)

    @pl.when(j == 0)
    def _():
        x = x_ref[...].astype(jnp.float32)
        inv_d = 1.0 / d_in
        mean = jnp.sum(x, axis=-1, keepdims=True) * inv_d
        xc = x - mean
        sq = jnp.sum(xc * xc, axis=-1, keepdims=True)
        if n_pad:
            sq = sq - n_pad * (mean * mean)
        inv = lax.rsqrt(sq * inv_d + LN_EPS)
        h = xc * (inv * ln_w_ref[...].astype(jnp.float32)) \
            + ln_b_ref[...].astype(jnp.float32)
        h_ref[...] = h.astype(h_ref.dtype)
        acc_ref[...] = jnp.zeros_like(acc_ref)

    # ReLU is elementwise, so hidden column slices relu(h @ W1[:, j] + b1[j])
    # are independent and can be contracted against W2[j, :] and accumulated.
    h1 = jnp.dot(h_ref[...], w1_ref[...], preferred_element_type=jnp.float32)
    h1 = jnp.maximum(h1 + b1_ref[...].astype(jnp.float32), 0.0)
    acc_ref[...] += jnp.dot(h1.astype(w2_ref.dtype), w2_ref[...],
                            preferred_element_type=jnp.float32)

    @pl.when(j == pl.num_programs(1) - 1)
    def _():
        o_ref[...] = (acc_ref[...]
                      + b2_ref[...].astype(jnp.float32)).astype(o_ref.dtype)


# ---------------------------------------------------------------------------
# Parameter preparation (do once, outside the per-call path)
# ---------------------------------------------------------------------------
def prepare_mlp_params(params, weight_dtype=None):
    """One-time transpose / pad / cast of the MLP parameters (cache result).

    params: ln_w, ln_b, b1: (D_in,); b2: (D_out,);
            w1: (D_in, D_in) in torch (out, in) layout;
            w2: (D_in, D_out) already laid out (in, out).
    weight_dtype: optional matmul-weight dtype.  bf16 is recommended on
            v6e/v7x (bf16-native MXUs, halves resident VMEM); LN/bias math
            and accumulation stay f32 either way.
    """
    ln_w, ln_b, w1, b1, w2, b2 = (params[k] for k in
                                  ("ln_w", "ln_b", "w1", "b1", "w2", "b2"))
    d_in = int(w1.shape[1])
    d_out = int(w2.shape[1])
    d_pi = _round_up(d_in, 128)
    d_po = _round_up(d_out, 128)
    wdt = jnp.dtype(weight_dtype) if weight_dtype is not None else jnp.dtype(w1.dtype)

    def pad_vec(v, n):
        v = jnp.asarray(v, jnp.float32)
        if v.shape[0] != n:
            v = jnp.pad(v, (0, n - v.shape[0]))
        return v.reshape(1, n)

    w1_t = jnp.asarray(w1).T  # torch (out, in) -> (in, out) for the MXU
    if d_pi != d_in:
        w1_p = jnp.pad(w1_t, ((0, d_pi - d_in), (0, d_pi - d_in)))
    else:
        w1_p = w1_t
    w2_a = jnp.asarray(w2)
    if d_pi != d_in or d_po != d_out:
        w2_p = jnp.pad(w2_a, ((0, d_pi - d_in), (0, d_po - d_out)))
    else:
        w2_p = w2_a

    return {
        "_prepared": True, "d_in": d_in, "d_out": d_out,
        "ln_w": pad_vec(ln_w, d_pi), "ln_b": pad_vec(ln_b, d_pi),
        "w1": w1_p.astype(wdt), "b1": pad_vec(b1, d_pi),
        "w2": w2_p.astype(wdt), "b2": pad_vec(b2, d_po),
    }


# ---------------------------------------------------------------------------
# Wrapper
# ---------------------------------------------------------------------------
def mlp_pallas(x, params, *, tm: int = 512, force_weight_tiling: bool = False,
               hidden_tile=None):
    """x: (..., D_in) -> (..., D_out).

    `params` may be a raw dict (see prepare_mlp_params) or an already
    prepared dict (preferred: prepare once and reuse across calls).
    """
    if not (isinstance(params, dict) and params.get("_prepared", False)):
        params = prepare_mlp_params(params)

    d_in, d_out = params["d_in"], params["d_out"]
    ln_w, ln_b, w1, b1, w2, b2 = (params[k] for k in
                                  ("ln_w", "ln_b", "w1", "b1", "w2", "b2"))
    d_pi = int(w1.shape[0])
    d_po = int(w2.shape[1])
    n_pad = d_pi - d_in

    lead = x.shape[:-1]
    rows = int(math.prod(lead)) if lead else 1
    x2 = x.reshape(rows, d_in)
    if d_pi != d_in:
        # Feature-lane zero padding only (lane-dense MXU feeds / stores).
        # Rows stay ragged; the grid handles the partial last tile.
        x2 = jnp.pad(x2, ((0, 0), (0, d_pi - d_in)))

    x_item = jnp.dtype(x.dtype).itemsize
    w_item = jnp.dtype(w1.dtype).itemsize
    sub = _sublane(x.dtype)

    # ---- generation-aware VMEM budget --------------------------------------
    cap = _vmem_capacity_bytes()            # 64 MiB (v7x) / 128 MiB (v5e/v6e)
    budget = (cap * 3) // 4                 # 48 MiB / 96 MiB working budget
    vmem_limit = int((cap * 7) // 8)        # never ask for more than physical

    w_bytes = (d_pi * d_pi + d_pi * d_po) * w_item       # single resident copy
    small_bytes = 4 * (3 * d_pi + d_po)                  # ln_w, ln_b, b1, b2
    x_bufs = 3 if d_pi <= 1024 else 2                    # deeper x pipeline when thin

    def resident_bytes(t):
        return (w_bytes + small_bytes
                + x_bufs * t * d_pi * x_item             # x tile (multi-buffered)
                + 2 * t * d_po * x_item                  # out tile (double-buffered)
                + 4 * t * (d_pi + d_po) * 4)             # rough f32 temporaries

    def tiled_bytes(t, tn):
        return (2 * (d_pi * tn + tn * d_po) * w_item     # streamed W1/W2 tiles
                + small_bytes
                + 2 * t * d_pi * x_item + 2 * t * d_po * x_item
                + t * d_pi * w_item                      # LayerNorm scratch
                + t * d_po * 4                           # f32 accumulator
                + 3 * t * max(tn, d_po) * 4)             # rough f32 temporaries

    # ---- row tile: MXU-height aligned (256 on v6e/v7x), sublane granular ---
    def align_tm(t):
        t = max(sub, min(int(t), _round_up(rows, sub)))
        if t >= 256:
            return (t // 256) * 256
        if t >= 128:
            return 128
        return _round_up(t, sub)

    tm_eff = align_tm(tm)
    # Keep >= 2 grid steps when there are enough rows for two MXU-height tiles
    # so v7x's second TensorCore (megacore) has work to pick up.
    if rows >= 512 and pl.cdiv(rows, tm_eff) < 2:
        tm_eff = align_tm(max(256, pl.cdiv(rows, 2)))

    # ---- resident vs weight-tiled decision ----------------------------------
    min_resident_tm = min(256, align_tm(rows))
    tm_res = tm_eff
    while tm_res > min_resident_tm and resident_bytes(tm_res) > budget:
        tm_res = align_tm(tm_res // 2)
    use_tiled = force_weight_tiling or resident_bytes(tm_res) > budget

    tn_h = None
    if not use_tiled:
        tm_eff = tm_res
    else:
        cands = [n for n in range(d_pi, 0, -128) if d_pi % n == 0]
        if hidden_tile is not None:
            assert hidden_tile % 128 == 0 and d_pi % hidden_tile == 0, hidden_tile
            tn_h = int(hidden_tile)
        else:
            tn_h = cands[-1]
            for n in cands:
                if tiled_bytes(tm_eff, n) <= budget:
                    tn_h = n
                    break
            while tm_eff > 128 and tiled_bytes(tm_eff, tn_h) > budget:
                tm_eff = align_tm(tm_eff // 2)

    steps = pl.cdiv(rows, tm_eff)
    if steps < 3:
        x_bufs = 2

    cost = pl.CostEstimate(
        flops=int(2 * rows * (d_pi * d_pi + d_pi * d_po) + 8 * rows * d_pi),
        transcendentals=int(rows),
        bytes_accessed=int(rows * (d_pi + d_po) * x_item + w_bytes + small_bytes),
    )

    def build_and_run(use_pipeline_modes):
        def bspec(shape, index_map, bufs=None):
            if use_pipeline_modes and bufs is not None:
                return pl.BlockSpec(shape, index_map,
                                    pipeline_mode=pl.Buffered(bufs))
            return pl.BlockSpec(shape, index_map)

        if not use_tiled:
            grid = (steps,)
            in_specs = [
                bspec((tm_eff, d_pi), lambda i: (i, 0), bufs=x_bufs),  # x tile
                bspec((1, d_pi), lambda i: (0, 0), bufs=1),            # ln_w
                bspec((1, d_pi), lambda i: (0, 0), bufs=1),            # ln_b
                bspec((d_pi, d_pi), lambda i: (0, 0), bufs=1),         # W1^T resident
                bspec((1, d_pi), lambda i: (0, 0), bufs=1),            # b1
                bspec((d_pi, d_po), lambda i: (0, 0), bufs=1),         # W2 resident
                bspec((1, d_po), lambda i: (0, 0), bufs=1),            # b2
            ]
            out_specs = pl.BlockSpec((tm_eff, d_po), lambda i: (i, 0))
            kernel = functools.partial(_mlp_kernel_resident, d_in=d_in, n_pad=n_pad)
            scratch = []
            # TODO(synk): if a v7x trace shows one TensorCore idle, move the row
            # axis to pltpu.CORE_PARALLEL / pl.core_map.
            dims = (pltpu.PARALLEL,)
        else:
            grid = (steps, d_pi // tn_h)
            in_specs = [
                pl.BlockSpec((tm_eff, d_pi), lambda i, j: (i, 0)),     # x (resident per i)
                bspec((1, d_pi), lambda i, j: (0, 0), bufs=1),         # ln_w
                bspec((1, d_pi), lambda i, j: (0, 0), bufs=1),         # ln_b
                pl.BlockSpec((d_pi, tn_h), lambda i, j: (0, j)),       # W1^T column tile
                pl.BlockSpec((1, tn_h), lambda i, j: (0, j)),          # b1 tile
                pl.BlockSpec((tn_h, d_po), lambda i, j: (j, 0)),       # W2 row tile
                bspec((1, d_po), lambda i, j: (0, 0), bufs=1),         # b2
            ]
            out_specs = pl.BlockSpec((tm_eff, d_po), lambda i, j: (i, 0))
            kernel = functools.partial(_mlp_kernel_tiled, d_in=d_in, n_pad=n_pad)
            scratch = [pltpu.VMEM((tm_eff, d_pi), w1.dtype),           # LN output
                       pltpu.VMEM((tm_eff, d_po), jnp.float32)]        # accumulator
            dims = (pltpu.PARALLEL, pltpu.ARBITRARY)

        return pl.pallas_call(
            kernel,
            out_shape=jax.ShapeDtypeStruct((rows, d_po), x.dtype),
            grid_spec=pltpu.PrefetchScalarGridSpec(
                num_scalar_prefetch=0, grid=grid,
                in_specs=in_specs, out_specs=out_specs,
                scratch_shapes=scratch),
            compiler_params=pltpu.CompilerParams(
                dimension_semantics=dims, vmem_limit_bytes=vmem_limit),
            cost_estimate=cost,
        )(x2, ln_w, ln_b, w1, b1, w2, b2)

    try:
        out = build_and_run(use_pipeline_modes=True)
    except Exception:
        # pipeline_mode=pl.Buffered(k) unavailable on this JAX/Mosaic build;
        # retry with default double-buffering (correctness unchanged).
        out = build_and_run(use_pipeline_modes=False)

    if d_po != d_out:
        out = out[:, :d_out]
    return out.reshape(*lead, d_out)


# ---------------------------------------------------------------------------
# Module-faithful init + pure-JAX reference
# ---------------------------------------------------------------------------
def init_mlp_params(key, in_dim, out_dim, dtype=jnp.float32):
    """Matches the module's __init__:
       - LayerNorm: weight=1, bias=0
       - Linear1: he_normal (fan_in) weight, zero bias
       - Linear2: final_init_ -> zero weight, zero bias
    """
    (k1,) = jax.random.split(key, 1)
    std = math.sqrt(2.0 / in_dim)
    w1 = (jax.random.normal(k1, (in_dim, in_dim), jnp.float32) * std).astype(dtype)
    return {
        "ln_w": jnp.ones((in_dim,), dtype),
        "ln_b": jnp.zeros((in_dim,), dtype),
        "w1": w1,                                   # torch layout (out, in)
        "b1": jnp.zeros((in_dim,), dtype),
        "w2": jnp.zeros((in_dim, out_dim), dtype),  # final_init_: zeros (in, out)
        "b2": jnp.zeros((out_dim,), dtype),
    }


def mlp_reference(x, params):
    """Pure-JAX reference for correctness checks."""
    mean = jnp.mean(x, axis=-1, keepdims=True)
    xc = x - mean
    var = jnp.mean(xc * xc, axis=-1, keepdims=True)
    h = xc * jax.lax.rsqrt(var + LN_EPS) * params["ln_w"] + params["ln_b"]
    h = jnp.maximum(h @ params["w1"].T + params["b1"], 0.0)
    return h @ params["w2"] + params["b2"]


if __name__ == "__main__":
    key = jax.random.PRNGKey(0)
    (kx, kp, k_ln_w, k_ln_b, k_b1, k_w2, k_b2,
     kx_rag, kx_b, kp_b) = jax.random.split(key, 10)

    batch, seq, in_dim, out_dim = 2, 8, 32, 16
    x = jax.random.normal(kx, (batch, seq, in_dim), dtype=jnp.float32)

    # (1) Module-faithful init (final Linear is zero-initialized).
    params = init_mlp_params(kp, in_dim, out_dim)
    prepared = prepare_mlp_params(params)          # one-time pad/transpose
    y = jax.block_until_ready(mlp_pallas(x, prepared))
    y_ref = mlp_reference(x, params)
    assert y.shape == (batch, seq, out_dim), y.shape
    assert jnp.allclose(y, y_ref, atol=1e-4, rtol=1e-4), "mismatch (module init)"

    # (2) Random affine/bias/final weights (full LN->Linear->ReLU->Linear path)
    #     on a row count that leaves a ragged last row tile (14 rows).
    params_rnd = dict(params)
    params_rnd["ln_w"] = 1.0 + 0.1 * jax.random.normal(k_ln_w, (in_dim,), jnp.float32)
    params_rnd["ln_b"] = 0.1 * jax.random.normal(k_ln_b, (in_dim,), jnp.float32)
    params_rnd["b1"] = 0.1 * jax.random.normal(k_b1, (in_dim,), jnp.float32)
    params_rnd["w2"] = 0.2 * jax.random.normal(k_w2, (in_dim, out_dim), jnp.float32)
    params_rnd["b2"] = 0.1 * jax.random.normal(k_b2, (out_dim,), jnp.float32)
    prepared_rnd = prepare_mlp_params(params_rnd)
    x_rag = jax.random.normal(kx_rag, (2, 7, in_dim), dtype=jnp.float32)
    y2 = jax.block_until_ready(mlp_pallas(x_rag, prepared_rnd))
    y2_ref = mlp_reference(x_rag, params_rnd)
    assert jnp.allclose(y2, y2_ref, atol=1e-4, rtol=1e-4), "mismatch (random/ragged)"

    # (3) bf16 weights (recommended on v6e/v7x bf16-native MXUs); looser tol.
    prepared_bf16 = prepare_mlp_params(params_rnd, weight_dtype=jnp.bfloat16)
    y3 = jax.block_until_ready(mlp_pallas(x_rag, prepared_bf16))
    assert jnp.allclose(y3, y2_ref, atol=5e-2, rtol=5e-2), "mismatch (bf16 weights)"

    # (4) Weight-tiled fallback (structural fallback for large d_in on v7x),
    #     forced at a small shape with two hidden tiles to exercise the
    #     accumulator path.
    in2, out2 = 256, 64
    x_b = jax.random.normal(kx_b, (batch, seq, in2), dtype=jnp.float32)
    kb = jax.random.split(kp_b, 6)
    params_b = {
        "ln_w": 1.0 + 0.1 * jax.random.normal(kb[0], (in2,), jnp.float32),
        "ln_b": 0.1 * jax.random.normal(kb[1], (in2,), jnp.float32),
        "w1": math.sqrt(2.0 / in2) * jax.random.normal(kb[2], (in2, in2), jnp.float32),
        "b1": 0.1 * jax.random.normal(kb[3], (in2,), jnp.float32),
        "w2": 0.1 * jax.random.normal(kb[4], (in2, out2), jnp.float32),
        "b2": 0.1 * jax.random.normal(kb[5], (out2,), jnp.float32),
    }
    y4 = jax.block_until_ready(
        mlp_pallas(x_b, prepare_mlp_params(params_b),
                   force_weight_tiling=True, hidden_tile=128))
    y4_ref = mlp_reference(x_b, params_b)
    assert jnp.allclose(y4, y4_ref, atol=1e-3, rtol=1e-3), "mismatch (weight-tiled)"

    print("KERNEL_OK")
</pallas_src>

<mosaic_0001>
module attributes {stable_mosaic.version = 11 : i64} {
  func.func @_mlp_kernel_resident(%arg0: i32, %arg1: memref<16x128xf32, #tpu.memory_space<vmem>>, %arg2: memref<1x128xf32, #tpu.memory_space<vmem>>, %arg3: memref<1x128xf32, #tpu.memory_space<vmem>>, %arg4: memref<128x128xf32, #tpu.memory_space<vmem>>, %arg5: memref<1x128xf32, #tpu.memory_space<vmem>>, %arg6: memref<128x128xf32, #tpu.memory_space<vmem>>, %arg7: memref<1x128xf32, #tpu.memory_space<vmem>>, %arg8: memref<16x128xf32, #tpu.memory_space<vmem>>) attributes {dimension_semantics = [#tpu.dimension_semantics<parallel>], iteration_bounds = array<i64: 1>, scalar_prefetch = 0 : i64, scratch_operands = 0 : i64, tpu.core_type = #tpu.core_type<tc>, window_params = [{pipeline_mode = #tpu.pipeline_mode<double_buffered>, transform_indices = @transform_0, window_bounds = array<i64: 16, 128>}, {pipeline_mode = #tpu.pipeline_mode<synchronous>, transform_indices = @transform_1, window_bounds = array<i64: 1, 128>}, {pipeline_mode = #tpu.pipeline_mode<synchronous>, transform_indices = @transform_2, window_bounds = array<i64: 1, 128>}, {pipeline_mode = #tpu.pipeline_mode<synchronous>, transform_indices = @transform_3, window_bounds = array<i64: 128, 128>}, {pipeline_mode = #tpu.pipeline_mode<synchronous>, transform_indices = @transform_4, window_bounds = array<i64: 1, 128>}, {pipeline_mode = #tpu.pipeline_mode<synchronous>, transform_indices = @transform_5, window_bounds = array<i64: 128, 128>}, {pipeline_mode = #tpu.pipeline_mode<synchronous>, transform_indices = @transform_6, window_bounds = array<i64: 1, 128>}, {transform_indices = @transform_7, window_bounds = array<i64: 16, 128>}]} {
    %c0 = arith.constant 0 : index
    %c0_0 = arith.constant 0 : index
    %0 = vector.load %arg1[%c0, %c0_0] : memref<16x128xf32, #tpu.memory_space<vmem>>, vector<16x128xf32>
    %cst = arith.constant dense<0.000000e+00> : vector<16xf32>
    %1 = vector.multi_reduction <add>, %0, %cst [1] : vector<16x128xf32> to vector<16xf32>
    %2 = vector.shape_cast %1 : vector<16xf32> to vector<16x1xf32>
    %cst_1 = arith.constant 3.125000e-02 : f32
    %3 = vector.broadcast %cst_1 : f32 to vector<16x1xf32>
    %4 = arith.mulf %2, %3 : vector<16x1xf32>
    %5 = vector.broadcast %4 : vector<16x1xf32> to vector<16x128xf32>
    %6 = arith.subf %0, %5 : vector<16x128xf32>
    %7 = arith.mulf %6, %6 : vector<16x128xf32>
    %cst_2 = arith.constant dense<0.000000e+00> : vector<16xf32>
    %8 = vector.multi_reduction <add>, %7, %cst_2 [1] : vector<16x128xf32> to vector<16xf32>
    %9 = vector.shape_cast %8 : vector<16xf32> to vector<16x1xf32>
    %10 = arith.mulf %4, %4 : vector<16x1xf32>
    %cst_3 = arith.constant 9.600000e+01 : f32
    %11 = vector.broadcast %cst_3 : f32 to vector<16x1xf32>
    %12 = arith.mulf %11, %10 : vector<16x1xf32>
    %13 = arith.subf %9, %12 : vector<16x1xf32>
    %cst_4 = arith.constant 3.125000e-02 : f32
    %14 = vector.broadcast %cst_4 : f32 to vector<16x1xf32>
    %15 = arith.mulf %13, %14 : vector<16x1xf32>
    %cst_5 = arith.constant 9.99999974E-6 : f32
    %16 = vector.broadcast %cst_5 : f32 to vector<16x1xf32>
    %17 = arith.addf %15, %16 : vector<16x1xf32>
    %18 = math.rsqrt %17 : vector<16x1xf32>
    %c0_6 = arith.constant 0 : index
    %c0_7 = arith.constant 0 : index
    %19 = vector.load %arg2[%c0_6, %c0_7] : memref<1x128xf32, #tpu.memory_space<vmem>>, vector<1x128xf32>
    %20 = vector.broadcast %18 : vector<16x1xf32> to vector<16x128xf32>
    %21 = vector.broadcast %19 : vector<1x128xf32> to vector<16x128xf32>
    %22 = arith.mulf %20, %21 : vector<16x128xf32>
    %23 = arith.mulf %6, %22 : vector<16x128xf32>
    %c0_8 = arith.constant 0 : index
    %c0_9 = arith.constant 0 : index
    %24 = vector.load %arg3[%c0_8, %c0_9] : memref<1x128xf32, #tpu.memory_space<vmem>>, vector<1x128xf32>
    %25 = vector.broadcast %24 : vector<1x128xf32> to vector<16x128xf32>
    %26 = arith.addf %23, %25 : vector<16x128xf32>
    %c0_10 = arith.constant 0 : index
    %c0_11 = arith.constant 0 : index
    %27 = vector.load %arg4[%c0_10, %c0_11] : memref<128x128xf32, #tpu.memory_space<vmem>>, vector<128x128xf32>
    %cst_12 = arith.constant dense<0.000000e+00> : vector<16x128xf32>
    %28 = tpu.matmul %26, %27, %cst_12 {dimension_numbers = #tpu.dot_dimension_numbers<[1], [0], [0], [1], [0, 0, 1, 1], [], []>} : vector<16x128xf32>, vector<128x128xf32>, vector<16x128xf32> -> vector<16x128xf32>
    %c0_13 = arith.constant 0 : index
    %c0_14 = arith.constant 0 : index
    %29 = vector.load %arg5[%c0_13, %c0_14] : memref<1x128xf32, #tpu.memory_space<vmem>>, vector<1x128xf32>
    %30 = vector.broadcast %29 : vector<1x128xf32> to vector<16x128xf32>
    %31 = arith.addf %28, %30 : vector<16x128xf32>
    %cst_15 = arith.constant 0.000000e+00 : f32
    %32 = vector.broadcast %cst_15 : f32 to vector<16x128xf32>
    %33 = arith.maximumf %31, %32 : vector<16x128xf32>
    %c0_16 = arith.constant 0 : index
    %c0_17 = arith.constant 0 : index
    %34 = vector.load %arg6[%c0_16, %c0_17] : memref<128x128xf32, #tpu.memory_space<vmem>>, vector<128x128xf32>
    %cst_18 = arith.constant dense<0.000000e+00> : vector<16x128xf32>
    %35 = tpu.matmul %33, %34, %cst_18 {dimension_numbers = #tpu.dot_dimension_numbers<[1], [0], [0], [1], [0, 0, 1, 1], [], []>} : vector<16x128xf32>, vector<128x128xf32>, vector<16x128xf32> -> vector<16x128xf32>
    %c0_19 = arith.constant 0 : index
    %c0_20 = arith.constant 0 : index
    %36 = vector.load %arg7[%c0_19, %c0_20] : memref<1x128xf32, #tpu.memory_space<vmem>>, vector<1x128xf32>
    %37 = vector.broadcast %36 : vector<1x128xf32> to vector<16x128xf32>
    %38 = arith.addf %35, %37 : vector<16x128xf32>
    %c0_21 = arith.constant 0 : index
    %c0_22 = arith.constant 0 : index
    %39 = vector.load %arg8[%c0_21, %c0_22] : memref<16x128xf32, #tpu.memory_space<vmem>>, vector<16x128xf32>
    tpu.vector_store %arg8[%c0_21, %c0_22], %38 {strides = array<i32>} : memref<16x128xf32, #tpu.memory_space<vmem>>, vector<16x128xf32>,
    return
  }
  func.func @transform_0(%arg0: i32) -> (i32, i32) {
    %c0_i32 = arith.constant 0 : i32
    %c0_i32_0 = arith.constant 0 : i32
    return %arg0, %c0_i32 : i32, i32
  }
  func.func @transform_1(%arg0: i32) -> (i32, i32) {
    %c0_i32 = arith.constant 0 : i32
    %c0_i32_0 = arith.constant 0 : i32
    %c0_i32_1 = arith.constant 0 : i32
    return %c0_i32, %c0_i32_0 : i32, i32
  }
  func.func @transform_2(%arg0: i32) -> (i32, i32) {
    %c0_i32 = arith.constant 0 : i32
    %c0_i32_0 = arith.constant 0 : i32
    %c0_i32_1 = arith.constant 0 : i32
    return %c0_i32, %c0_i32_0 : i32, i32
  }
  func.func @transform_3(%arg0: i32) -> (i32, i32) {
    %c0_i32 = arith.constant 0 : i32
    %c0_i32_0 = arith.constant 0 : i32
    %c0_i32_1 = arith.constant 0 : i32
    return %c0_i32, %c0_i32_0 : i32, i32
  }
  func.func @transform_4(%arg0: i32) -> (i32, i32) {
    %c0_i32 = arith.constant 0 : i32
    %c0_i32_0 = arith.constant 0 : i32
    %c0_i32_1 = arith.constant 0 : i32
    return %c0_i32, %c0_i32_0 : i32, i32
  }
  func.func @transform_5(%arg0: i32) -> (i32, i32) {
    %c0_i32 = arith.constant 0 : i32
    %c0_i32_0 = arith.constant 0 : i32
    %c0_i32_1 = arith.constant 0 : i32
    return %c0_i32, %c0_i32_0 : i32, i32
  }
  func.func @transform_6(%arg0: i32) -> (i32, i32) {
    %c0_i32 = arith.constant 0 : i32
    %c0_i32_0 = arith.constant 0 : i32
    %c0_i32_1 = arith.constant 0 : i32
    return %c0_i32, %c0_i32_0 : i32, i32
  }
  func.func @transform_7(%arg0: i32) -> (i32, i32) {
    %c0_i32 = arith.constant 0 : i32
    %c0_i32_0 = arith.constant 0 : i32
    return %arg0, %c0_i32 : i32, i32
  }
}

module attributes {stable_mosaic.version = 11 : i64} {
  func.func @_mlp_kernel_resident(%arg0: i32, %arg1: memref<16x128xf32, #tpu.memory_space<vmem>>, %arg2: memref<1x128xf32, #tpu.memory_space<vmem>>, %arg3: memref<1x128xf32, #tpu.memory_space<vmem>>, %arg4: memref<128x128xf32, #tpu.memory_space<vmem>>, %arg5: memref<1x128xf32, #tpu.memory_space<vmem>>, %arg6: memref<128x128xf32, #tpu.memory_space<vmem>>, %arg7: memref<1x128xf32, #tpu.memory_space<vmem>>, %arg8: memref<16x128xf32, #tpu.memory_space<vmem>>) attributes {dimension_semantics = [#tpu.dimension_semantics<parallel>], iteration_bounds = array<i64: 1>, scalar_prefetch = 0 : i64, scratch_operands = 0 : i64, tpu.core_type = #tpu.core_type<tc>, window_params = [{transform_indices = @transform_0, window_bounds = array<i64: 16, 128>}, {pipeline_mode = #tpu.pipeline_mode<synchronous>, transform_indices = @transform_1, window_bounds = array<i64: 1, 128>}, {pipeline_mode = #tpu.pipeline_mode<synchronous>, transform_indices = @transform_2, window_bounds = array<i64: 1, 128>}, {pipeline_mode = #tpu.pipeline_mode<synchronous>, transform_indices = @transform_3, window_bounds = array<i64: 128, 128>}, {pipeline_mode = #tpu.pipeline_mode<synchronous>, transform_indices = @transform_4, window_bounds = array<i64: 1, 128>}, {pipeline_mode = #tpu.pipeline_mode<synchronous>, transform_indices = @transform_5, window_bounds = array<i64: 128, 128>}, {pipeline_mode = #tpu.pipeline_mode<synchronous>, transform_indices = @transform_6, window_bounds = array<i64: 1, 128>}, {transform_indices = @transform_7, window_bounds = array<i64: 16, 128>}]} {
    %c0 = arith.constant 0 : index
    %c0_0 = arith.constant 0 : index
    %0 = vector.load %arg1[%c0, %c0_0] : memref<16x128xf32, #tpu.memory_space<vmem>>, vector<16x128xf32>
    %cst = arith.constant dense<0.000000e+00> : vector<16xf32>
    %1 = vector.multi_reduction <add>, %0, %cst [1] : vector<16x128xf32> to vector<16xf32>
    %2 = vector.shape_cast %1 : vector<16xf32> to vector<16x1xf32>
    %cst_1 = arith.constant 3.125000e-02 : f32
    %3 = vector.broadcast %cst_1 : f32 to vector<16x1xf32>
    %4 = arith.mulf %2, %3 : vector<16x1xf32>
    %5 = vector.broadcast %4 : vector<16x1xf32> to vector<16x128xf32>
    %6 = arith.subf %0, %5 : vector<16x128xf32>
    %7 = arith.mulf %6, %6 : vector<16x128xf32>
    %cst_2 = arith.constant dense<0.000000e+00> : vector<16xf32>
    %8 = vector.multi_reduction <add>, %7, %cst_2 [1] : vector<16x128xf32> to vector<16xf32>
    %9 = vector.shape_cast %8 : vector<16xf32> to vector<16x1xf32>
    %10 = arith.mulf %4, %4 : vector<16x1xf32>
    %cst_3 = arith.constant 9.600000e+01 : f32
    %11 = vector.broadcast %cst_3 : f32 to vector<16x1xf32>
    %12 = arith.mulf %11, %10 : vector<16x1xf32>
    %13 = arith.subf %9, %12 : vector<16x1xf32>
    %cst_4 = arith.constant 3.125000e-02 : f32
    %14 = vector.broadcast %cst_4 : f32 to vector<16x1xf32>
    %15 = arith.mulf %13, %14 : vector<16x1xf32>
    %cst_5 = arith.constant 9.99999974E-6 : f32
    %16 = vector.broadcast %cst_5 : f32 to vector<16x1xf32>
    %17 = arith.addf %15, %16 : vector<16x1xf32>
    %18 = math.rsqrt %17 : vector<16x1xf32>
    %c0_6 = arith.constant 0 : index
    %c0_7 = arith.constant 0 : index
    %19 = vector.load %arg2[%c0_6, %c0_7] : memref<1x128xf32, #tpu.memory_space<vmem>>, vector<1x128xf32>
    %20 = vector.broadcast %18 : vector<16x1xf32> to vector<16x128xf32>
    %21 = vector.broadcast %19 : vector<1x128xf32> to vector<16x128xf32>
    %22 = arith.mulf %20, %21 : vector<16x128xf32>
    %23 = arith.mulf %6, %22 : vector<16x128xf32>
    %c0_8 = arith.constant 0 : index
    %c0_9 = arith.constant 0 : index
    %24 = vector.load %arg3[%c0_8, %c0_9] : memref<1x128xf32, #tpu.memory_space<vmem>>, vector<1x128xf32>
    %25 = vector.broadcast %24 : vector<1x128xf32> to vector<16x128xf32>
    %26 = arith.addf %23, %25 : vector<16x128xf32>
    %c0_10 = arith.constant 0 : index
    %c0_11 = arith.constant 0 : index
    %27 = vector.load %arg4[%c0_10, %c0_11] : memref<128x128xf32, #tpu.memory_space<vmem>>, vector<128x128xf32>
    %cst_12 = arith.constant dense<0.000000e+00> : vector<16x128xf32>
    %28 = tpu.matmul %26, %27, %cst_12 {dimension_numbers = #tpu.dot_dimension_numbers<[1], [0], [0], [1], [0, 0, 1, 1], [], []>} : vector<16x128xf32>, vector<128x128xf32>, vector<16x128xf32> -> vector<16x128xf32>
    %c0_13 = arith.constant 0 : index
    %c0_14 = arith.constant 0 : index
    %29 = vector.load %arg5[%c0_13, %c0_14] : memref<1x128xf32, #tpu.memory_space<vmem>>, vector<1x128xf32>
    %30 = vector.broadcast %29 : vector<1x128xf32> to vector<16x128xf32>
    %31 = arith.addf %28, %30 : vector<16x128xf32>
    %cst_15 = arith.constant 0.000000e+00 : f32
    %32 = vector.broadcast %cst_15 : f32 to vector<16x128xf32>
    %33 = arith.maximumf %31, %32 : vector<16x128xf32>
    %c0_16 = arith.constant 0 : index
    %c0_17 = arith.constant 0 : index
    %34 = vector.load %arg6[%c0_16, %c0_17] : memref<128x128xf32, #tpu.memory_space<vmem>>, vector<128x128xf32>
    %cst_18 = arith.constant dense<0.000000e+00> : vector<16x128xf32>
    %35 = tpu.matmul %33, %34, %cst_18 {dimension_numbers = #tpu.dot_dimension_numbers<[1], [0], [0], [1], [0, 0, 1, 1], [], []>} : vector<16x128xf32>, vector<128x128xf32>, vector<16x128xf32> -> vector<16x128xf32>
    %c0_19 = arith.constant 0 : index
    %c0_20 = arith.constant 0 : index
    %36 = vector.load %arg7[%c0_19, %c0_20] : memref<1x128xf32, #tpu.memory_space<vmem>>, vector<1x128xf32>
    %37 = vector.broadcast %36 : vector<1x128xf32> to vector<16x128xf32>
    %38 = arith.addf %35, %37 : vector<16x128xf32>
    %c0_21 = arith.constant 0 : index
    %c0_22 = arith.constant 0 : index
    %39 = vector.load %arg8[%c0_21, %c0_22] : memref<16x128xf32, #tpu.memory_space<vmem>>, vector<16x128xf32>
    tpu.vector_store %arg8[%c0_21, %c0_22], %38 {strides = array<i32>} : memref<16x128xf32, #tpu.memory_space<vmem>>, vector<16x128xf32>,
    return
  }
  func.func @transform_0(%arg0: i32) -> (i32, i32) {
    %c0_i32 = arith.constant 0 : i32
    %c0_i32_0 = arith.constant 0 : i32
    return %arg0, %c0_i32 : i32, i32
  }
  func.func @transform_1(%arg0: i32) -> (i32, i32) {
    %c0_i32 = arith.constant 0 : i32
    %c0_i32_0 = arith.constant 0 : i32
    %c0_i32_1 = arith.constant 0 : i32
    return %c0_i32, %c0_i32_0 : i32, i32
  }
  func.func @transform_2(%arg0: i32) -> (i32, i32) {
    %c0_i32 = arith.constant 0 : i32
    %c0_i32_0 = arith.constant 0 : i32
    %c0_i32_1 = arith.constant 0 : i32
    return %c0_i32, %c0_i32_0 : i32, i32
  }
  func.func @transform_3(%arg0: i32) -> (i32, i32) {
    %c0_i32 = arith.constant 0 : i32
    %c0_i32_0 = arith.constant 0 : i32
    %c0_i32_1 = arith.constant 0 : i32
    return %c0_i32, %c0_i32_0 : i32, i32
  }
  func.func @transform_4(%arg0: i32) -> (i32, i32) {
    %c0_i32 = arith.constant 0 : i32
    %c0_i32_0 = arith.constant 0 : i32
    %c0_i32_1 = arith.constant 0 : i32
    return %c0_i32, %c0_i32_0 : i32, i32
  }
  func.func @transform_5(%arg0: i32) -> (i32, i32) {
    %c0_i32 = arith.constant 0 : i32
    %c0_i32_0 = arith.constant 0 : i32
    %c0_i32_1 = arith.constant 0 : i32
    return %c0_i32, %c0_i32_0 : i32, i32
  }
  func.func @transform_6(%arg0: i32) -> (i32, i32) {
    %c0_i32 = arith.constant 0 : i32
    %c0_i32_0 = arith.constant 0 : i32
    %c0_i32_1 = arith.constant 0 : i32
    return %c0_i32, %c0_i32_0 : i32, i32
  }
  func.func @transform_7(%arg0: i32) -> (i32, i32) {
    %c0_i32 = arith.constant 0 : i32
    %c0_i32_0 = arith.constant 0 : i32
    return %arg0, %c0_i32 : i32, i32
  }
}

</mosaic_0001>

<llo_original>
// kernel: tpu_custom_call.1
$region0: #{tpu_custom_call.1}
  #allocation0 [shape = 'u32[]', space=smem, size = 0x4, offset = 0x4, fixed_abs, tag = 'smem constant byte address 0x4 - core index']
  #allocation1 [shape = 'u32[144,128]{1,0:T(1,128)}', space=vmem, size = 0x12000, scoped, tag = 'internal scratch']
  %s0 = inlined_call_operand.hbm [shape: f32[16,128], index: 0, kind: input, shape index: {}]
  %s1 = inlined_call_operand.vmem [shape: f32[1,128], index: 1, kind: input, shape index: {}]
  %s2 = inlined_call_operand.vmem [shape: f32[1,128], index: 2, kind: input, shape index: {}]
  %s3 = inlined_call_operand.hbm [shape: f32[128,128], index: 3, kind: input, shape index: {}]
  %s4 = inlined_call_operand.vmem [shape: f32[1,128], index: 4, kind: input, shape index: {}]
  %s5 = inlined_call_operand.hbm [shape: f32[128,128], index: 5, kind: input, shape index: {}]
  %s6 = inlined_call_operand.vmem [shape: f32[1,128], index: 6, kind: input, shape index: {}]
  %s7 = inlined_call_operand.hbm [shape: f32[16,128], index: 7, kind: output, shape index: {}]
  %s8 = sld [smem:[#allocation0]]
  $region50: #{tpu_custom_call.1} parent=0
    _
  %s10 = ssub.s32 1, %s8
  %s11 = scalar_select 0, %s10, %s8
  $region1: #{tpu_custom_call.1} parent=0
    #allocation2 [shape = 'u8[8192]{0}', space=vmem, size = 0x2000, scoped, tag = 'input window, operand 0, single buffered']
    #allocation3 [shape = 's32[1]{0}', space=sflag, size = 0x4, scoped, tag = 'scoped memory for tpu_custom_call.1']
    #allocation4 [shape = 's32[1]{0}', space=sflag, size = 0x4, scoped, tag = 'scoped memory for tpu_custom_call.1']
    #allocation5 [shape = 'u8[65536]{0}', space=vmem, size = 0x10000, scoped, tag = 'input window, operand 3, single buffered']
    #allocation6 [shape = 's32[1]{0}', space=sflag, size = 0x4, scoped, tag = 'scoped memory for tpu_custom_call.1']
    #allocation7 [shape = 'u8[65536]{0}', space=vmem, size = 0x10000, scoped, tag = 'input window, operand 5, single buffered']
    #allocation8 [shape = 'u8[8192]{0}', space=vmem, size = 0x2000, scoped, tag = 'output window, operand 0, single buffered']
    %12 = vsyncpa [#allocation3], 0
    %13 = vsyncpa [#allocation6], 0
    %14 = vsyncpa [#allocation4], 0
    // Predicated region
    $region2: #{tpu_custom_call.1} parent=1 // pred_check
      _
    $region3: #{tpu_custom_call.1} parent=1 // pred_check_branch
      %16 = sbr.rel (0) target = $region5
    $region4: #{tpu_custom_call.1} parent=1 // pred_region
      %s18 = ssub.s32 256, 256
      %19 = vsyncadd [#allocation3], %s18
      %s20 = sshll.u32 [#allocation2], 4
      %s21 = int_to_ptr.vmem [resolvable:$true] %s20
      %26 = dma.hbm_to_vmem [thread:$0]  %s0, 256, %s21, [#allocation3], 128, 128, 8
    $region5: #{tpu_custom_call.1} parent=1 // pred_fallthru
      _
    // Predicated region
    $region6: #{tpu_custom_call.1} parent=1 // pred_check
      _
    $region7: #{tpu_custom_call.1} parent=1 // pred_check_branch
      %28 = sbr.rel (0) target = $region9
    $region8: #{tpu_custom_call.1} parent=1 // pred_region
      _
    $region9: #{tpu_custom_call.1} parent=1 // pred_fallthru
      _
    // Predicated region
    $region10: #{tpu_custom_call.1} parent=1 // pred_check
      _
    $region11: #{tpu_custom_call.1} parent=1 // pred_check_branch
      %30 = sbr.rel (0) target = $region13
    $region12: #{tpu_custom_call.1} parent=1 // pred_region
      _
    $region13: #{tpu_custom_call.1} parent=1 // pred_fallthru
      _
    // Predicated region
    $region14: #{tpu_custom_call.1} parent=1 // pred_check
      _
    $region15: #{tpu_custom_call.1} parent=1 // pred_check_branch
      %32 = sbr.rel (0) target = $region17
    $region16: #{tpu_custom_call.1} parent=1 // pred_region
      %s34 = ssub.s32 2048, 2048
      %35 = vsyncadd [#allocation6], %s34
      %s36 = sshll.u32 [#allocation5], 4
      %s37 = int_to_ptr.vmem [resolvable:$true] %s36
      %42 = dma.hbm_to_vmem [thread:$0]  %s3, 2048, %s37, [#allocation6], 128, 128, 8
    $region17: #{tpu_custom_call.1} parent=1 // pred_fallthru
      _
    // Predicated region
    $region18: #{tpu_custom_call.1} parent=1 // pred_check
      _
    $region19: #{tpu_custom_call.1} parent=1 // pred_check_branch
      %44 = sbr.rel (0) target = $region21
    $region20: #{tpu_custom_call.1} parent=1 // pred_region
      _
    $region21: #{tpu_custom_call.1} parent=1 // pred_fallthru
      _
    // Predicated region
    $region22: #{tpu_custom_call.1} parent=1 // pred_check
      _
    $region23: #{tpu_custom_call.1} parent=1 // pred_check_branch
      %46 = sbr.rel (0) target = $region25
    $region24: #{tpu_custom_call.1} parent=1 // pred_region
      %s48 = ssub.s32 2048, 2048
      %49 = vsyncadd [#allocation6], %s48
      %s50 = sshll.u32 [#allocation7], 4
      %s51 = int_to_ptr.vmem [resolvable:$true] %s50
      %56 = dma.hbm_to_vmem [thread:$0]  %s5, 2048, %s51, [#allocation6], 128, 128, 8
    $region25: #{tpu_custom_call.1} parent=1 // pred_fallthru
      _
    // Predicated region
    $region26: #{tpu_custom_call.1} parent=1 // pred_check
      _
    $region27: #{tpu_custom_call.1} parent=1 // pred_check_branch
      %58 = sbr.rel (0) target = $region29
    $region28: #{tpu_custom_call.1} parent=1 // pred_region
      _
    $region29: #{tpu_custom_call.1} parent=1 // pred_fallthru
      _
    // Predicated region
    $region30: #{tpu_custom_call.1} parent=1 // pred_check
      _
    $region31: #{tpu_custom_call.1} parent=1 // pred_check_branch
      %60 = sbr.rel (0) target = $region33
    $region32: #{tpu_custom_call.1} parent=1 // pred_region
      %61 = dma.done [#allocation3], 256
    $region33: #{tpu_custom_call.1} parent=1 // pred_fallthru
      _
    // Predicated region
    $region34: #{tpu_custom_call.1} parent=1 // pred_check
      _
    $region35: #{tpu_custom_call.1} parent=1 // pred_check_branch
      %63 = sbr.rel (0) target = $region37
    $region36: #{tpu_custom_call.1} parent=1 // pred_region
      %64 = dma.done [#allocation6], 2048
    $region37: #{tpu_custom_call.1} parent=1 // pred_fallthru
      _
    // Predicated region
    $region38: #{tpu_custom_call.1} parent=1 // pred_check
      _
    $region39: #{tpu_custom_call.1} parent=1 // pred_check_branch
      %66 = sbr.rel (0) target = $region41
    $region40: #{tpu_custom_call.1} parent=1 // pred_region
      %67 = dma.done [#allocation6], 2048
    $region41: #{tpu_custom_call.1} parent=1 // pred_fallthru
      _
    %v68 = vld [vmem:[#allocation2] sm:$0xff]
    %v69 = vld [vmem:[#allocation2 + $0x8] sm:$0xff]
    %70 = vadd.xlane.f32.xlu0 %v68
    %v71 = vpop.xlane.xlu0 %70
    %72 = vadd.xlane.f32.xlu0 %v69
    %v73 = vpop.xlane.xlu0 %72
    %v74 = vmul.f32 %v71, 0.03125
    %v75 = vmul.f32 %v73, 0.03125
    %v76 = vsub.f32 %v68, %v74
    %v77 = vsub.f32 %v69, %v75
    %v78 = vmul.f32 %v76, %v76
    %v79 = vmul.f32 %v77, %v77
    %80 = vadd.xlane.f32.xlu0 %v78
    %v81 = vpop.xlane.xlu0 %80
    %82 = vadd.xlane.f32.xlu0 %v79
    %v83 = vpop.xlane.xlu0 %82
    %v84 = vmul.f32 %v74, %v74
    %v85 = vmul.f32 %v75, %v75
    %v86 = vmul.f32 %v84, 96.0
    %v87 = vmul.f32 %v85, 96.0
    %v88 = vsub.f32 %v81, %v86
    %v89 = vsub.f32 %v83, %v87
    %v90 = vmul.f32 %v88, 0.03125
    %v91 = vmul.f32 %v89, 0.03125
    %v92 = vadd.f32 %v90, 1e-05
    %v93 = vadd.f32 %v91, 1e-05
    %v94 = vrsqrt.pop %v92
    %v95 = vrsqrt.pop %v93
    %v96 = vld [vmem:[%s1] sm:$0x1]
    %v98 = vlaneseq
    %v99 = vshrl.u32 %v98, 7
    %v100 = vsub.s32 0, %v99
    %v101 = vrot.slane %v96, %v100
    %v103 = vmul.f32 %v94, %v101
    %v104 = vmul.f32 %v95, %v101
    %v105 = vmul.f32 %v76, %v103
    %v106 = vmul.f32 %v77, %v104
    %v107 = vld [vmem:[%s2] sm:$0x1]
    %v109 = vlaneseq
    %v110 = vshrl.u32 %v109, 7
    %v111 = vsub.s32 0, %v110
    %v112 = vrot.slane %v107, %v111
    %v114 = vadd.f32 %v105, %v112
    %v115 = vadd.f32 %v106, %v112
    %v116 = vld [vmem:[#allocation5] sm:$0xff]
    %v117 = vld [vmem:[#allocation5 + $0x8] sm:$0xff]
    %v118 = vld [vmem:[#allocation5 + $0x10] sm:$0xff]
    %v119 = vld [vmem:[#allocation5 + $0x18] sm:$0xff]
    %v120 = vld [vmem:[#allocation5 + $0x20] sm:$0xff]
    %v121 = vld [vmem:[#allocation5 + $0x28] sm:$0xff]
    %v122 = vld [vmem:[#allocation5 + $0x30] sm:$0xff]
    %v123 = vld [vmem:[#allocation5 + $0x38] sm:$0xff]
    %v124 = vld [vmem:[#allocation5 + $0x40] sm:$0xff]
    %v125 = vld [vmem:[#allocation5 + $0x48] sm:$0xff]
    %v126 = vld [vmem:[#allocation5 + $0x50] sm:$0xff]
    %v127 = vld [vmem:[#allocation5 + $0x58] sm:$0xff]
    %v128 = vld [vmem:[#allocation5 + $0x60] sm:$0xff]
    %v129 = vld [vmem:[#allocation5 + $0x68] sm:$0xff]
    %v130 = vld [vmem:[#allocation5 + $0x70] sm:$0xff]
    %v131 = vld [vmem:[#allocation5 + $0x78] sm:$0xff]
    %v132 = vld [vmem:[%s4] sm:$0x1]
    %v134 = vlaneseq
    %v135 = vshrl.u32 %v134, 7
    %v136 = vsub.s32 0, %v135
    %v137 = vrot.slane %v132, %v136
    %139 = vmatprep.subr.mxu0 0.0
    %140 = vmatpush1.msra.mxu0 %v116
    %141 = vmatprep.subr.mxu0 0.0
    %142 = vmatpush1.msra.mxu0 %v117
    %143 = vmatprep.subr.mxu0 0.0
    %144 = vmatpush1.msra.mxu0 %v118
    %145 = vmatprep.subr.mxu0 0.0
    %146 = vmatpush1.msra.mxu0 %v119
    %147 = vmatprep.subr.mxu0 0.0
    %148 = vmatpush1.msra.mxu0 %v120
    %149 = vmatprep.subr.mxu0 0.0
    %150 = vmatpush1.msra.mxu0 %v121
    %151 = vmatprep.subr.mxu0 0.0
    %152 = vmatpush1.msra.mxu0 %v122
    %153 = vmatprep.subr.mxu0 0.0
    %154 = vmatpush1.msra.mxu0 %v123
    %155 = vmatprep.subr.mxu0 0.0
    %156 = vmatpush1.msra.mxu0 %v124
    %157 = vmatprep.subr.mxu0 0.0
    %158 = vmatpush1.msra.mxu0 %v125
    %159 = vmatprep.subr.mxu0 0.0
    %160 = vmatpush1.msra.mxu0 %v126
    %161 = vmatprep.subr.mxu0 0.0
    %162 = vmatpush1.msra.mxu0 %v127
    %163 = vmatprep.subr.mxu0 0.0
    %164 = vmatpush1.msra.mxu0 %v128
    %165 = vmatprep.subr.mxu0 0.0
    %166 = vmatpush1.msra.mxu0 %v129
    %167 = vmatprep.subr.mxu0 0.0
    %168 = vmatpush1.msra.mxu0 %v130
    %169 = vmatprep.subr.mxu0 0.0
    %170 = vmatpush1.msra.mxu0 %v131
    %171 = vmatprep.subr.mxu0 0.0
    %172 = vmatpush1.msra.mxu0 0.0
    %173 = vmatprep.subr.mxu0 0.0
    %174 = vmatpush1.msra.mxu0 0.0
    %175 = vmatprep.subr.mxu0 0.0
    %176 = vmatpush1.msra.mxu0 0.0
    %177 = vmatprep.subr.mxu0 0.0
    %178 = vmatpush1.msra.mxu0 0.0
    %179 = vmatprep.subr.mxu0 0.0
    %180 = vmatpush1.msra.mxu0 0.0
    %181 = vmatprep.subr.mxu0 0.0
    %182 = vmatpush1.msra.mxu0 0.0
    %183 = vmatprep.subr.mxu0 0.0
    %184 = vmatpush1.msra.mxu0 0.0
    %185 = vmatprep.subr.mxu0 0.0
    %186 = vmatpush1.msra.mxu0 0.0
    %187 = vmatprep.subr.mxu0 0.0
    %188 = vmatpush1.msra.mxu0 0.0
    %189 = vmatprep.subr.mxu0 0.0
    %190 = vmatpush1.msra.mxu0 0.0
    %191 = vmatprep.subr.mxu0 0.0
    %192 = vmatpush1.msra.mxu0 0.0
    %193 = vmatprep.subr.mxu0 0.0
    %194 = vmatpush1.msra.mxu0 0.0
    %195 = vmatprep.subr.mxu0 0.0
    %196 = vmatpush1.msra.mxu0 0.0
    %197 = vmatprep.subr.mxu0 0.0
    %198 = vmatpush1.msra.mxu0 0.0
    %199 = vmatprep.subr.mxu0 0.0
    %200 = vmatpush1.msra.mxu0 0.0
    %201 = vmatprep.subr.mxu0 0.0
    %202 = vmatpush1.msra.mxu0 0.0
    %203 = vmatprep.mubr.f32.mxu0 0.0
    %204 = vmatmul.mubr.f32.gmra.mrb[0].mxu0 %v114
    %v205 = vpop.f32.mrb[0].mxu0
    %v206 = vadd.f32 %v137, %v205
    %v207 = vpop.f32.mrb[0].mxu0
    %208 = vmatprep.mubr.f32.mxu0 0.0
    %209 = vmatmul.mubr.f32.gmra.mrb[0].mxu0 %v115
    %v210 = vpop.f32.mrb[0].mxu0
    %v211 = vadd.f32 %v137, %v210
    %v212 = vpop.f32.mrb[0].mxu0
    %213 = vdwg.mxu0
    %v214 = vmax.f32 %v206, 0.0
    %v215 = vmax.f32 %v211, 0.0
    %v216 = vld [vmem:[#allocation7] sm:$0xff]
    %v217 = vld [vmem:[#allocation7 + $0x8] sm:$0xff]
    %v218 = vld [vmem:[#allocation7 + $0x10] sm:$0xff]
    %v219 = vld [vmem:[#allocation7 + $0x18] sm:$0xff]
    %v220 = vld [vmem:[#allocation7 + $0x20] sm:$0xff]
    %v221 = vld [vmem:[#allocation7 + $0x28] sm:$0xff]
    %v222 = vld [vmem:[#allocation7 + $0x30] sm:$0xff]
    %v223 = vld [vmem:[#allocation7 + $0x38] sm:$0xff]
    %v224 = vld [vmem:[#allocation7 + $0x40] sm:$0xff]
    %v225 = vld [vmem:[#allocation7 + $0x48] sm:$0xff]
    %v226 = vld [vmem:[#allocation7 + $0x50] sm:$0xff]
    %v227 = vld [vmem:[#allocation7 + $0x58] sm:$0xff]
    %v228 = vld [vmem:[#allocation7 + $0x60] sm:$0xff]
    %v229 = vld [vmem:[#allocation7 + $0x68] sm:$0xff]
    %v230 = vld [vmem:[#allocation7 + $0x70] sm:$0xff]
    %v231 = vld [vmem:[#allocation7 + $0x78] sm:$0xff]
    %v232 = vld [vmem:[%s6] sm:$0x1]
    %v234 = vlaneseq
    %v235 = vshrl.u32 %v234, 7
    %v236 = vsub.s32 0, %v235
    %v237 = vrot.slane %v232, %v236
    %239 = vmatprep.subr.mxu0 0.0
    %240 = vmatpush1.msra.mxu0 %v216
    %241 = vmatprep.subr.mxu0 0.0
    %242 = vmatpush1.msra.mxu0 %v217
    %243 = vmatprep.subr.mxu0 0.0
    %244 = vmatpush1.msra.mxu0 %v218
    %245 = vmatprep.subr.mxu0 0.0
    %246 = vmatpush1.msra.mxu0 %v219
    %247 = vmatprep.subr.mxu0 0.0
    %248 = vmatpush1.msra.mxu0 %v220
    %249 = vmatprep.subr.mxu0 0.0
    %250 = vmatpush1.msra.mxu0 %v221
    %251 = vmatprep.subr.mxu0 0.0
    %252 = vmatpush1.msra.mxu0 %v222
    %253 = vmatprep.subr.mxu0 0.0
    %254 = vmatpush1.msra.mxu0 %v223
    %255 = vmatprep.subr.mxu0 0.0
    %256 = vmatpush1.msra.mxu0 %v224
    %257 = vmatprep.subr.mxu0 0.0
    %258 = vmatpush1.msra.mxu0 %v225
    %259 = vmatprep.subr.mxu0 0.0
    %260 = vmatpush1.msra.mxu0 %v226
    %261 = vmatprep.subr.mxu0 0.0
    %262 = vmatpush1.msra.mxu0 %v227
    %263 = vmatprep.subr.mxu0 0.0
    %264 = vmatpush1.msra.mxu0 %v228
    %265 = vmatprep.subr.mxu0 0.0
    %266 = vmatpush1.msra.mxu0 %v229
    %267 = vmatprep.subr.mxu0 0.0
    %268 = vmatpush1.msra.mxu0 %v230
    %269 = vmatprep.subr.mxu0 0.0
    %270 = vmatpush1.msra.mxu0 %v231
    %271 = vmatprep.subr.mxu0 0.0
    %272 = vmatpush1.msra.mxu0 0.0
    %273 = vmatprep.subr.mxu0 0.0
    %274 = vmatpush1.msra.mxu0 0.0
    %275 = vmatprep.subr.mxu0 0.0
    %276 = vmatpush1.msra.mxu0 0.0
    %277 = vmatprep.subr.mxu0 0.0
    %278 = vmatpush1.msra.mxu0 0.0
    %279 = vmatprep.subr.mxu0 0.0
    %280 = vmatpush1.msra.mxu0 0.0
    %281 = vmatprep.subr.mxu0 0.0
    %282 = vmatpush1.msra.mxu0 0.0
    %283 = vmatprep.subr.mxu0 0.0
    %284 = vmatpush1.msra.mxu0 0.0
    %285 = vmatprep.subr.mxu0 0.0
    %286 = vmatpush1.msra.mxu0 0.0
    %287 = vmatprep.subr.mxu0 0.0
    %288 = vmatpush1.msra.mxu0 0.0
    %289 = vmatprep.subr.mxu0 0.0
    %290 = vmatpush1.msra.mxu0 0.0
    %291 = vmatprep.subr.mxu0 0.0
    %292 = vmatpush1.msra.mxu0 0.0
    %293 = vmatprep.subr.mxu0 0.0
    %294 = vmatpush1.msra.mxu0 0.0
    %295 = vmatprep.subr.mxu0 0.0
    %296 = vmatpush1.msra.mxu0 0.0
    %297 = vmatprep.subr.mxu0 0.0
    %298 = vmatpush1.msra.mxu0 0.0
    %299 = vmatprep.subr.mxu0 0.0
    %300 = vmatpush1.msra.mxu0 0.0
    %301 = vmatprep.subr.mxu0 0.0
    %302 = vmatpush1.msra.mxu0 0.0
    %303 = vmatprep.mubr.f32.mxu0 0.0
    %304 = vmatmul.mubr.f32.gmra.mrb[0].mxu0 %v214
    %v305 = vpop.f32.mrb[0].mxu0
    %v306 = vadd.f32 %v237, %v305
    %v307 = vpop.f32.mrb[0].mxu0
    %308 = vmatprep.mubr.f32.mxu0 0.0
    %309 = vmatmul.mubr.f32.gmra.mrb[0].mxu0 %v215
    %v310 = vpop.f32.mrb[0].mxu0
    %v311 = vadd.f32 %v237, %v310
    %v312 = vpop.f32.mrb[0].mxu0
    %313 = vdwg.mxu0
    %314 = vst [vmem:[#allocation8] sm:$0xff] %v306
    %315 = vst [vmem:[#allocation8 + $0x8] sm:$0xff] %v311
    // Predicated region
    $region42: #{tpu_custom_call.1} parent=1 // pred_check
      _
    $region43: #{tpu_custom_call.1} parent=1 // pred_check_branch
      %317 = sbr.rel (0) target = $region45
    $region44: #{tpu_custom_call.1} parent=1 // pred_region
      %s319 = ssub.s32 256, 256
      %320 = vsyncadd [#allocation4], %s319
      %s321 = sshll.u32 [#allocation8], 4
      %s322 = int_to_ptr.vmem [resolvable:$true] %s321
      %327 = dma.vmem_to_hbm [thread:$0]  %s322, 256, %s7, [#allocation4], 128, 128, 8
    $region45: #{tpu_custom_call.1} parent=1 // pred_fallthru
      _
    // Predicated region
    $region46: #{tpu_custom_call.1} parent=1 // pred_check
      _
    $region47: #{tpu_custom_call.1} parent=1 // pred_check_branch
      %329 = sbr.rel (0) target = $region49
    $region48: #{tpu_custom_call.1} parent=1 // pred_region
      %330 = dma.done [#allocation4], 256
    $region49: #{tpu_custom_call.1} parent=1 // pred_fallthru
      _
    %331 = vsyncpa [#allocation3], 1
    %332 = vsyncpa [#allocation6], 1
    %333 = vsyncpa [#allocation4], 1

// kernel: tpu_custom_call.1
$region0: #{tpu_custom_call.1}
  #allocation0 [shape = 'u32[]', space=smem, size = 0x4, offset = 0x4, fixed_abs, tag = 'smem constant byte address 0x4 - core index']
  #allocation1 [shape = 'u32[144,128]{1,0:T(1,128)}', space=vmem, size = 0x12000, scoped, tag = 'internal scratch']
  %s0 = inlined_call_operand.hbm [shape: f32[16,128], index: 0, kind: input, shape index: {}]
  %s1 = inlined_call_operand.vmem [shape: f32[1,128], index: 1, kind: input, shape index: {}]
  %s2 = inlined_call_operand.vmem [shape: f32[1,128], index: 2, kind: input, shape index: {}]
  %s3 = inlined_call_operand.hbm [shape: f32[128,128], index: 3, kind: input, shape index: {}]
  %s4 = inlined_call_operand.vmem [shape: f32[1,128], index: 4, kind: input, shape index: {}]
  %s5 = inlined_call_operand.hbm [shape: f32[128,128], index: 5, kind: input, shape index: {}]
  %s6 = inlined_call_operand.vmem [shape: f32[1,128], index: 6, kind: input, shape index: {}]
  %s7 = inlined_call_operand.hbm [shape: f32[16,128], index: 7, kind: output, shape index: {}]
  %s8 = sld [smem:[#allocation0]]
  $region50: #{tpu_custom_call.1} parent=0
    _
  %s10 = ssub.s32 1, %s8
  %s11 = scalar_select 0, %s10, %s8
  $region1: #{tpu_custom_call.1} parent=0
    #allocation2 [shape = 'u8[8192]{0}', space=vmem, size = 0x2000, scoped, tag = 'input window, operand 0, single buffered']
    #allocation3 [shape = 's32[1]{0}', space=sflag, size = 0x4, scoped, tag = 'scoped memory for tpu_custom_call.1']
    #allocation4 [shape = 's32[1]{0}', space=sflag, size = 0x4, scoped, tag = 'scoped memory for tpu_custom_call.1']
    #allocation5 [shape = 'u8[65536]{0}', space=vmem, size = 0x10000, scoped, tag = 'input window, operand 3, single buffered']
    #allocation6 [shape = 's32[1]{0}', space=sflag, size = 0x4, scoped, tag = 'scoped memory for tpu_custom_call.1']
    #allocation7 [shape = 'u8[65536]{0}', space=vmem, size = 0x10000, scoped, tag = 'input window, operand 5, single buffered']
    #allocation8 [shape = 'u8[8192]{0}', space=vmem, size = 0x2000, scoped, tag = 'output window, operand 0, single buffered']
    %12 = vsyncpa [#allocation3], 0
    %13 = vsyncpa [#allocation6], 0
    %14 = vsyncpa [#allocation4], 0
    // Predicated region
    $region2: #{tpu_custom_call.1} parent=1 // pred_check
      _
    $region3: #{tpu_custom_call.1} parent=1 // pred_check_branch
      %16 = sbr.rel (0) target = $region5
    $region4: #{tpu_custom_call.1} parent=1 // pred_region
      %s18 = ssub.s32 256, 256
      %19 = vsyncadd [#allocation3], %s18
      %s20 = sshll.u32 [#allocation2], 4
      %s21 = int_to_ptr.vmem [resolvable:$true] %s20
      %26 = dma.hbm_to_vmem [thread:$0]  %s0, 256, %s21, [#allocation3], 128, 128, 8
    $region5: #{tpu_custom_call.1} parent=1 // pred_fallthru
      _
    // Predicated region
    $region6: #{tpu_custom_call.1} parent=1 // pred_check
      _
    $region7: #{tpu_custom_call.1} parent=1 // pred_check_branch
      %28 = sbr.rel (0) target = $region9
    $region8: #{tpu_custom_call.1} parent=1 // pred_region
      _
    $region9: #{tpu_custom_call.1} parent=1 // pred_fallthru
      _
    // Predicated region
    $region10: #{tpu_custom_call.1} parent=1 // pred_check
      _
    $region11: #{tpu_custom_call.1} parent=1 // pred_check_branch
      %30 = sbr.rel (0) target = $region13
    $region12: #{tpu_custom_call.1} parent=1 // pred_region
      _
    $region13: #{tpu_custom_call.1} parent=1 // pred_fallthru
      _
    // Predicated region
    $region14: #{tpu_custom_call.1} parent=1 // pred_check
      _
    $region15: #{tpu_custom_call.1} parent=1 // pred_check_branch
      %32 = sbr.rel (0) target = $region17
    $region16: #{tpu_custom_call.1} parent=1 // pred_region
      %s34 = ssub.s32 2048, 2048
      %35 = vsyncadd [#allocation6], %s34
      %s36 = sshll.u32 [#allocation5], 4
      %s37 = int_to_ptr.vmem [resolvable:$true] %s36
      %42 = dma.hbm_to_vmem [thread:$0]  %s3, 2048, %s37, [#allocation6], 128, 128, 8
    $region17: #{tpu_custom_call.1} parent=1 // pred_fallthru
      _
    // Predicated region
    $region18: #{tpu_custom_call.1} parent=1 // pred_check
      _
    $region19: #{tpu_custom_call.1} parent=1 // pred_check_branch
      %44 = sbr.rel (0) target = $region21
    $region20: #{tpu_custom_call.1} parent=1 // pred_region
      _
    $region21: #{tpu_custom_call.1} parent=1 // pred_fallthru
      _
    // Predicated region
    $region22: #{tpu_custom_call.1} parent=1 // pred_check
      _
    $region23: #{tpu_custom_call.1} parent=1 // pred_check_branch
      %46 = sbr.rel (0) target = $region25
    $region24: #{tpu_custom_call.1} parent=1 // pred_region
      %s48 = ssub.s32 2048, 2048
      %49 = vsyncadd [#allocation6], %s48
      %s50 = sshll.u32 [#allocation7], 4
      %s51 = int_to_ptr.vmem [resolvable:$true] %s50
      %56 = dma.hbm_to_vmem [thread:$0]  %s5, 2048, %s51, [#allocation6], 128, 128, 8
    $region25: #{tpu_custom_call.1} parent=1 // pred_fallthru
      _
    // Predicated region
    $region26: #{tpu_custom_call.1} parent=1 // pred_check
      _
    $region27: #{tpu_custom_call.1} parent=1 // pred_check_branch
      %58 = sbr.rel (0) target = $region29
    $region28: #{tpu_custom_call.1} parent=1 // pred_region
      _
    $region29: #{tpu_custom_call.1} parent=1 // pred_fallthru
      _
    // Predicated region
    $region30: #{tpu_custom_call.1} parent=1 // pred_check
      _
    $region31: #{tpu_custom_call.1} parent=1 // pred_check_branch
      %60 = sbr.rel (0) target = $region33
    $region32: #{tpu_custom_call.1} parent=1 // pred_region
      %61 = dma.done [#allocation3], 256
    $region33: #{tpu_custom_call.1} parent=1 // pred_fallthru
      _
    // Predicated region
    $region34: #{tpu_custom_call.1} parent=1 // pred_check
      _
    $region35: #{tpu_custom_call.1} parent=1 // pred_check_branch
      %63 = sbr.rel (0) target = $region37
    $region36: #{tpu_custom_call.1} parent=1 // pred_region
      %64 = dma.done [#allocation6], 2048
    $region37: #{tpu_custom_call.1} parent=1 // pred_fallthru
      _
    // Predicated region
    $region38: #{tpu_custom_call.1} parent=1 // pred_check
      _
    $region39: #{tpu_custom_call.1} parent=1 // pred_check_branch
      %66 = sbr.rel (0) target = $region41
    $region40: #{tpu_custom_call.1} parent=1 // pred_region
      %67 = dma.done [#allocation6], 2048
    $region41: #{tpu_custom_call.1} parent=1 // pred_fallthru
      _
    %v68 = vld [vmem:[#allocation2] sm:$0xff]
    %v69 = vld [vmem:[#allocation2 + $0x8] sm:$0xff]
    %70 = vadd.xlane.f32.xlu0 %v68
    %v71 = vpop.xlane.xlu0 %70
    %72 = vadd.xlane.f32.xlu0 %v69
    %v73 = vpop.xlane.xlu0 %72
    %v74 = vmul.f32 %v71, 0.03125
    %v75 = vmul.f32 %v73, 0.03125
    %v76 = vsub.f32 %v68, %v74
    %v77 = vsub.f32 %v69, %v75
    %v78 = vmul.f32 %v76, %v76
    %v79 = vmul.f32 %v77, %v77
    %80 = vadd.xlane.f32.xlu0 %v78
    %v81 = vpop.xlane.xlu0 %80
    %82 = vadd.xlane.f32.xlu0 %v79
    %v83 = vpop.xlane.xlu0 %82
    %v84 = vmul.f32 %v74, %v74
    %v85 = vmul.f32 %v75, %v75
    %v86 = vmul.f32 %v84, 96.0
    %v87 = vmul.f32 %v85, 96.0
    %v88 = vsub.f32 %v81, %v86
    %v89 = vsub.f32 %v83, %v87
    %v90 = vmul.f32 %v88, 0.03125
    %v91 = vmul.f32 %v89, 0.03125
    %v92 = vadd.f32 %v90, 1e-05
    %v93 = vadd.f32 %v91, 1e-05
    %v94 = vrsqrt.pop %v92
    %v95 = vrsqrt.pop %v93
    %v96 = vld [vmem:[%s1] sm:$0x1]
    %v98 = vlaneseq
    %v99 = vshrl.u32 %v98, 7
    %v100 = vsub.s32 0, %v99
    %v101 = vrot.slane %v96, %v100
    %v103 = vmul.f32 %v94, %v101
    %v104 = vmul.f32 %v95, %v101
    %v105 = vmul.f32 %v76, %v103
    %v106 = vmul.f32 %v77, %v104
    %v107 = vld [vmem:[%s2] sm:$0x1]
    %v109 = vlaneseq
    %v110 = vshrl.u32 %v109, 7
    %v111 = vsub.s32 0, %v110
    %v112 = vrot.slane %v107, %v111
    %v114 = vadd.f32 %v105, %v112
    %v115 = vadd.f32 %v106, %v112
    %v116 = vld [vmem:[#allocation5] sm:$0xff]
    %v117 = vld [vmem:[#allocation5 + $0x8] sm:$0xff]
    %v118 = vld [vmem:[#allocation5 + $0x10] sm:$0xff]
    %v119 = vld [vmem:[#allocation5 + $0x18] sm:$0xff]
    %v120 = vld [vmem:[#allocation5 + $0x20] sm:$0xff]
    %v121 = vld [vmem:[#allocation5 + $0x28] sm:$0xff]
    %v122 = vld [vmem:[#allocation5 + $0x30] sm:$0xff]
    %v123 = vld [vmem:[#allocation5 + $0x38] sm:$0xff]
    %v124 = vld [vmem:[#allocation5 + $0x40] sm:$0xff]
    %v125 = vld [vmem:[#allocation5 + $0x48] sm:$0xff]
    %v126 = vld [vmem:[#allocation5 + $0x50] sm:$0xff]
    %v127 = vld [vmem:[#allocation5 + $0x58] sm:$0xff]
    %v128 = vld [vmem:[#allocation5 + $0x60] sm:$0xff]
    %v129 = vld [vmem:[#allocation5 + $0x68] sm:$0xff]
    %v130 = vld [vmem:[#allocation5 + $0x70] sm:$0xff]
    %v131 = vld [vmem:[#allocation5 + $0x78] sm:$0xff]
    %v132 = vld [vmem:[%s4] sm:$0x1]
    %v134 = vlaneseq
    %v135 = vshrl.u32 %v134, 7
    %v136 = vsub.s32 0, %v135
    %v137 = vrot.slane %v132, %v136
    %139 = vmatprep.subr.mxu0 0.0
    %140 = vmatpush1.msra.mxu0 %v116
    %141 = vmatprep.subr.mxu0 0.0
    %142 = vmatpush1.msra.mxu0 %v117
    %143 = vmatprep.subr.mxu0 0.0
    %144 = vmatpush1.msra.mxu0 %v118
    %145 = vmatprep.subr.mxu0 0.0
    %146 = vmatpush1.msra.mxu0 %v119
    %147 = vmatprep.subr.mxu0 0.0
    %148 = vmatpush1.msra.mxu0 %v120
    %149 = vmatprep.subr.mxu0 0.0
    %150 = vmatpush1.msra.mxu0 %v121
    %151 = vmatprep.subr.mxu0 0.0
    %152 = vmatpush1.msra.mxu0 %v122
    %153 = vmatprep.subr.mxu0 0.0
    %154 = vmatpush1.msra.mxu0 %v123
    %155 = vmatprep.subr.mxu0 0.0
    %156 = vmatpush1.msra.mxu0 %v124
    %157 = vmatprep.subr.mxu0 0.0
    %158 = vmatpush1.msra.mxu0 %v125
    %159 = vmatprep.subr.mxu0 0.0
    %160 = vmatpush1.msra.mxu0 %v126
    %161 = vmatprep.subr.mxu0 0.0
    %162 = vmatpush1.msra.mxu0 %v127
    %163 = vmatprep.subr.mxu0 0.0
    %164 = vmatpush1.msra.mxu0 %v128
    %165 = vmatprep.subr.mxu0 0.0
    %166 = vmatpush1.msra.mxu0 %v129
    %167 = vmatprep.subr.mxu0 0.0
    %168 = vmatpush1.msra.mxu0 %v130
    %169 = vmatprep.subr.mxu0 0.0
    %170 = vmatpush1.msra.mxu0 %v131
    %171 = vmatprep.subr.mxu0 0.0
    %172 = vmatpush1.msra.mxu0 0.0
    %173 = vmatprep.subr.mxu0 0.0
    %174 = vmatpush1.msra.mxu0 0.0
    %175 = vmatprep.subr.mxu0 0.0
    %176 = vmatpush1.msra.mxu0 0.0
    %177 = vmatprep.subr.mxu0 0.0
    %178 = vmatpush1.msra.mxu0 0.0
    %179 = vmatprep.subr.mxu0 0.0
    %180 = vmatpush1.msra.mxu0 0.0
    %181 = vmatprep.subr.mxu0 0.0
    %182 = vmatpush1.msra.mxu0 0.0
    %183 = vmatprep.subr.mxu0 0.0
    %184 = vmatpush1.msra.mxu0 0.0
    %185 = vmatprep.subr.mxu0 0.0
    %186 = vmatpush1.msra.mxu0 0.0
    %187 = vmatprep.subr.mxu0 0.0
    %188 = vmatpush1.msra.mxu0 0.0
    %189 = vmatprep.subr.mxu0 0.0
    %190 = vmatpush1.msra.mxu0 0.0
    %191 = vmatprep.subr.mxu0 0.0
    %192 = vmatpush1.msra.mxu0 0.0
    %193 = vmatprep.subr.mxu0 0.0
    %194 = vmatpush1.msra.mxu0 0.0
    %195 = vmatprep.subr.mxu0 0.0
    %196 = vmatpush1.msra.mxu0 0.0
    %197 = vmatprep.subr.mxu0 0.0
    %198 = vmatpush1.msra.mxu0 0.0
    %199 = vmatprep.subr.mxu0 0.0
    %200 = vmatpush1.msra.mxu0 0.0
    %201 = vmatprep.subr.mxu0 0.0
    %202 = vmatpush1.msra.mxu0 0.0
    %203 = vmatprep.mubr.f32.mxu0 0.0
    %204 = vmatmul.mubr.f32.gmra.mrb[0].mxu0 %v114
    %v205 = vpop.f32.mrb[0].mxu0
    %v206 = vadd.f32 %v137, %v205
    %v207 = vpop.f32.mrb[0].mxu0
    %208 = vmatprep.mubr.f32.mxu0 0.0
    %209 = vmatmul.mubr.f32.gmra.mrb[0].mxu0 %v115
    %v210 = vpop.f32.mrb[0].mxu0
    %v211 = vadd.f32 %v137, %v210
    %v212 = vpop.f32.mrb[0].mxu0
    %213 = vdwg.mxu0
    %v214 = vmax.f32 %v206, 0.0
    %v215 = vmax.f32 %v211, 0.0
    %v216 = vld [vmem:[#allocation7] sm:$0xff]
    %v217 = vld [vmem:[#allocation7 + $0x8] sm:$0xff]
    %v218 = vld [vmem:[#allocation7 + $0x10] sm:$0xff]
    %v219 = vld [vmem:[#allocation7 + $0x18] sm:$0xff]
    %v220 = vld [vmem:[#allocation7 + $0x20] sm:$0xff]
    %v221 = vld [vmem:[#allocation7 + $0x28] sm:$0xff]
    %v222 = vld [vmem:[#allocation7 + $0x30] sm:$0xff]
    %v223 = vld [vmem:[#allocation7 + $0x38] sm:$0xff]
    %v224 = vld [vmem:[#allocation7 + $0x40] sm:$0xff]
    %v225 = vld [vmem:[#allocation7 + $0x48] sm:$0xff]
    %v226 = vld [vmem:[#allocation7 + $0x50] sm:$0xff]
    %v227 = vld [vmem:[#allocation7 + $0x58] sm:$0xff]
    %v228 = vld [vmem:[#allocation7 + $0x60] sm:$0xff]
    %v229 = vld [vmem:[#allocation7 + $0x68] sm:$0xff]
    %v230 = vld [vmem:[#allocation7 + $0x70] sm:$0xff]
    %v231 = vld [vmem:[#allocation7 + $0x78] sm:$0xff]
    %v232 = vld [vmem:[%s6] sm:$0x1]
    %v234 = vlaneseq
    %v235 = vshrl.u32 %v234, 7
    %v236 = vsub.s32 0, %v235
    %v237 = vrot.slane %v232, %v236
    %239 = vmatprep.subr.mxu0 0.0
    %240 = vmatpush1.msra.mxu0 %v216
    %241 = vmatprep.subr.mxu0 0.0
    %242 = vmatpush1.msra.mxu0 %v217
    %243 = vmatprep.subr.mxu0 0.0
    %244 = vmatpush1.msra.mxu0 %v218
    %245 = vmatprep.subr.mxu0 0.0
    %246 = vmatpush1.msra.mxu0 %v219
    %247 = vmatprep.subr.mxu0 0.0
    %248 = vmatpush1.msra.mxu0 %v220
    %249 = vmatprep.subr.mxu0 0.0
    %250 = vmatpush1.msra.mxu0 %v221
    %251 = vmatprep.subr.mxu0 0.0
    %252 = vmatpush1.msra.mxu0 %v222
    %253 = vmatprep.subr.mxu0 0.0
    %254 = vmatpush1.msra.mxu0 %v223
    %255 = vmatprep.subr.mxu0 0.0
    %256 = vmatpush1.msra.mxu0 %v224
    %257 = vmatprep.subr.mxu0 0.0
    %258 = vmatpush1.msra.mxu0 %v225
    %259 = vmatprep.subr.mxu0 0.0
    %260 = vmatpush1.msra.mxu0 %v226
    %261 = vmatprep.subr.mxu0 0.0
    %262 = vmatpush1.msra.mxu0 %v227
    %263 = vmatprep.subr.mxu0 0.0
    %264 = vmatpush1.msra.mxu0 %v228
    %265 = vmatprep.subr.mxu0 0.0
    %266 = vmatpush1.msra.mxu0 %v229
    %267 = vmatprep.subr.mxu0 0.0
    %268 = vmatpush1.msra.mxu0 %v230
    %269 = vmatprep.subr.mxu0 0.0
    %270 = vmatpush1.msra.mxu0 %v231
    %271 = vmatprep.subr.mxu0 0.0
    %272 = vmatpush1.msra.mxu0 0.0
    %273 = vmatprep.subr.mxu0 0.0
    %274 = vmatpush1.msra.mxu0 0.0
    %275 = vmatprep.subr.mxu0 0.0
    %276 = vmatpush1.msra.mxu0 0.0
    %277 = vmatprep.subr.mxu0 0.0
    %278 = vmatpush1.msra.mxu0 0.0
    %279 = vmatprep.subr.mxu0 0.0
    %280 = vmatpush1.msra.mxu0 0.0
    %281 = vmatprep.subr.mxu0 0.0
    %282 = vmatpush1.msra.mxu0 0.0
    %283 = vmatprep.subr.mxu0 0.0
    %284 = vmatpush1.msra.mxu0 0.0
    %285 = vmatprep.subr.mxu0 0.0
    %286 = vmatpush1.msra.mxu0 0.0
    %287 = vmatprep.subr.mxu0 0.0
    %288 = vmatpush1.msra.mxu0 0.0
    %289 = vmatprep.subr.mxu0 0.0
    %290 = vmatpush1.msra.mxu0 0.0
    %291 = vmatprep.subr.mxu0 0.0
    %292 = vmatpush1.msra.mxu0 0.0
    %293 = vmatprep.subr.mxu0 0.0
    %294 = vmatpush1.msra.mxu0 0.0
    %295 = vmatprep.subr.mxu0 0.0
    %296 = vmatpush1.msra.mxu0 0.0
    %297 = vmatprep.subr.mxu0 0.0
    %298 = vmatpush1.msra.mxu0 0.0
    %299 = vmatprep.subr.mxu0 0.0
    %300 = vmatpush1.msra.mxu0 0.0
    %301 = vmatprep.subr.mxu0 0.0
    %302 = vmatpush1.msra.mxu0 0.0
    %303 = vmatprep.mubr.f32.mxu0 0.0
    %304 = vmatmul.mubr.f32.gmra.mrb[0].mxu0 %v214
    %v305 = vpop.f32.mrb[0].mxu0
    %v306 = vadd.f32 %v237, %v305
    %v307 = vpop.f32.mrb[0].mxu0
    %308 = vmatprep.mubr.f32.mxu0 0.0
    %309 = vmatmul.mubr.f32.gmra.mrb[0].mxu0 %v215
    %v310 = vpop.f32.mrb[0].mxu0
    %v311 = vadd.f32 %v237, %v310
    %v312 = vpop.f32.mrb[0].mxu0
    %313 = vdwg.mxu0
    %314 = vst [vmem:[#allocation8] sm:$0xff] %v306
    %315 = vst [vmem:[#allocation8 + $0x8] sm:$0xff] %v311
    // Predicated region
    $region42: #{tpu_custom_call.1} parent=1 // pred_check
      _
    $region43: #{tpu_custom_call.1} parent=1 // pred_check_branch
      %317 = sbr.rel (0) target = $region45
    $region44: #{tpu_custom_call.1} parent=1 // pred_region
      %s319 = ssub.s32 256, 256
      %320 = vsyncadd [#allocation4], %s319
      %s321 = sshll.u32 [#allocation8], 4
      %s322 = int_to_ptr.vmem [resolvable:$true] %s321
      %327 = dma.vmem_to_hbm [thread:$0]  %s322, 256, %s7, [#allocation4], 128, 128, 8
    $region45: #{tpu_custom_call.1} parent=1 // pred_fallthru
      _
    // Predicated region
    $region46: #{tpu_custom_call.1} parent=1 // pred_check
      _
    $region47: #{tpu_custom_call.1} parent=1 // pred_check_branch
      %329 = sbr.rel (0) target = $region49
    $region48: #{tpu_custom_call.1} parent=1 // pred_region
      %330 = dma.done [#allocation4], 256
    $region49: #{tpu_custom_call.1} parent=1 // pred_fallthru
      _
    %331 = vsyncpa [#allocation3], 1
    %332 = vsyncpa [#allocation6], 1
    %333 = vsyncpa [#allocation4], 1

</llo_original>
